<compile_context>
chip_gen: v5e
topology: v5e:2x2
jax: 0.10.0
libtpu: 0.0.40
codegen_flags: <defaults>
</compile_context>

<pallas_src>
import functools
import math

import jax
import jax.numpy as jnp
from jax.experimental import pallas as pl
from jax.experimental.pallas import tpu as pltpu

# ~8 MiB of f32 compute per block (2M elements).
_TARGET_BLOCK_ELEMS = 2 * 1024 * 1024
# Lane-dense last-dim candidates (large multiples of 128 -> wide unmasked stores).
_LANE_CANDIDATES = (1024, 512, 256, 128)
# 4x double-buffered in+out (<= 32 MiB at the target block size) + headroom for
# elementwise temporaries.  48 MiB fits v7x's 64 MiB/TC and v5e/v6e's 128 MiB.
_VMEM_LIMIT_BYTES = 48 * 1024 * 1024


def _enforce_positivity_kernel(x_ref, o_ref, *, mode: str):
    # Compute in f32 regardless of storage dtype (free: the kernel is
    # memory-bound; avoids bf16 precision loss in x*x).
    x = x_ref[...].astype(jnp.float32)
    if mode == "huber":
        ax = jnp.abs(x)
        y = jnp.where(ax < 1.0, 0.5 * x * x, ax - 0.5)
    elif mode == "abs":
        y = jnp.abs(x)
    elif mode == "sqr":
        y = x * x
    else:
        raise ValueError(f"unknown mode: {mode}")
    o_ref[...] = y.astype(o_ref.dtype)


def _round_up(a: int, b: int) -> int:
    return (a + b - 1) // b * b


def _as_2d_shape(shape, n_elem):
    """Pick a copy-free 2D view of the flattened tensor."""
    # Preferred: lane-dense factoring (reshape of a contiguous array is free).
    for lane in _LANE_CANDIDATES:
        if n_elem % lane == 0:
            return n_elem // lane, lane
    # Fallback (n not a multiple of 128): collapse leading dims, keep the last
    # dim as a full-extent lane block.  Narrower stores, but zero extra HBM
    # traffic (no pad / slice copies).
    if len(shape) >= 2:
        return math.prod(shape[:-1]), shape[-1]
    return 1, n_elem


def enforce_positivity(x: jax.Array, mode: str = "huber") -> jax.Array:
    """Elementwise positivity penalty, same shape/dtype as input."""
    orig_shape = x.shape
    n_elem = x.size
    if n_elem == 0:
        return x

    rows, cols = _as_2d_shape(orig_shape, n_elem)
    x2d = x.reshape(rows, cols)  # free contiguous reshape, no copy

    itemsize = jnp.dtype(x.dtype).itemsize
    # Hard sublane requirement is 8; packed dtypes want 16 (bf16) / 32 (int8).
    sub = max(8, 32 // max(itemsize, 1))

    if rows <= sub:
        block_rows = rows  # full-extent block, single grid step
    else:
        target_rows = max(sub, (_TARGET_BLOCK_ELEMS // cols) // sub * sub)
        # Cap at ~half the rows so the grid always has >= 2 blocks, letting
        # both v7x TensorCores work under dimension_semantics=("parallel",).
        half_rows = _round_up(pl.cdiv(rows, 2), sub)
        block_rows = min(target_rows, half_rows)

    num_blocks = pl.cdiv(rows, block_rows)  # ragged last block handled by Pallas
    spec = pl.BlockSpec((block_rows, cols), lambda i: (i, 0))

    out2d = pl.pallas_call(
        functools.partial(_enforce_positivity_kernel, mode=mode),
        out_shape=jax.ShapeDtypeStruct((rows, cols), x.dtype),
        grid=(num_blocks,),
        in_specs=[spec],
        out_specs=spec,
        compiler_params=pltpu.CompilerParams(
            dimension_semantics=("parallel",),
            vmem_limit_bytes=_VMEM_LIMIT_BYTES,
        ),
    )(x2d)

    # TODO(synk): standalone this op is HBM-roofline bound; fusing it into its
    # producer/consumer kernel is the real (~2x) end-to-end win.
    return out2d.reshape(orig_shape)


def _reference(x, mode):
    xf = x.astype(jnp.float32)
    if mode == "huber":
        ax = jnp.abs(xf)
        r = jnp.where(ax < 1.0, 0.5 * xf * xf, ax - 0.5)
    elif mode == "abs":
        r = jnp.abs(xf)
    else:  # sqr
        r = xf * xf
    return r.astype(x.dtype)


if __name__ == "__main__":
    key = jax.random.PRNGKey(0)
    k1, k2, k3, k4 = jax.random.split(key, 4)

    ok = True

    # NCHW input, regular size (lane-dense path, single block).
    x = jax.random.normal(k1, (2, 4, 16, 16), dtype=jnp.float32) * 2.0
    for mode in ("huber", "abs", "sqr"):
        y = jax.block_until_ready(enforce_positivity(x, mode=mode))
        ref = _reference(x, mode)
        if y.shape != x.shape or y.dtype != x.dtype:
            ok = False
        if not jnp.allclose(y, ref, atol=1e-6, rtol=1e-6):
            ok = False

    # Irregular size (fallback 2D-collapse path; no pad/slice copies).
    x_odd = jax.random.normal(k2, (3, 5, 7, 11), dtype=jnp.float32) * 2.0
    for mode in ("huber", "abs", "sqr"):
        y = jax.block_until_ready(enforce_positivity(x_odd, mode=mode))
        ref = _reference(x_odd, mode)
        if y.shape != x_odd.shape or y.dtype != x_odd.dtype:
            ok = False
        if not jnp.allclose(y, ref, atol=1e-6, rtol=1e-6):
            ok = False

    # Larger lane-dense input: exercises the >=2-block grid and the ragged
    # (partially out-of-bounds) last row-block.
    x_big = jax.random.normal(k4, (5, 8, 32, 32), dtype=jnp.float32) * 2.0
    for mode in ("huber", "abs", "sqr"):
        y = jax.block_until_ready(enforce_positivity(x_big, mode=mode))
        ref = _reference(x_big, mode)
        if y.shape != x_big.shape or y.dtype != x_big.dtype:
            ok = False
        if not jnp.allclose(y, ref, atol=1e-6, rtol=1e-6):
            ok = False

    # bf16 input (in-kernel f32 compute, packed-sublane alignment).
    x_bf = (jax.random.normal(k3, (2, 4, 16, 16), dtype=jnp.float32) * 2.0).astype(
        jnp.bfloat16
    )
    y = jax.block_until_ready(enforce_positivity(x_bf, mode="huber"))
    ref = _reference(x_bf, "huber")
    if y.shape != x_bf.shape or y.dtype != x_bf.dtype:
        ok = False
    if not jnp.allclose(
        y.astype(jnp.float32), ref.astype(jnp.float32), atol=2e-2, rtol=2e-2
    ):
        ok = False

    if ok:
        print("KERNEL_OK")
</pallas_src>

<mosaic_0001>
module attributes {stable_mosaic.version = 11 : i64} {
  func.func @_enforce_positivity_kernel(%arg0: i32, %arg1: memref<2x1024xf32, #tpu.memory_space<vmem>>, %arg2: memref<2x1024xf32, #tpu.memory_space<vmem>>) attributes {dimension_semantics = [#tpu.dimension_semantics<parallel>], iteration_bounds = array<i64: 1>, scalar_prefetch = 0 : i64, scratch_operands = 0 : i64, tpu.core_type = #tpu.core_type<tc>, window_params = [{transform_indices = @transform_0, window_bounds = array<i64: 2, 1024>}, {transform_indices = @transform_1, window_bounds = array<i64: 2, 1024>}]} {
    %c0 = arith.constant 0 : index
    %c0_0 = arith.constant 0 : index
    %0 = vector.load %arg1[%c0, %c0_0] : memref<2x1024xf32, #tpu.memory_space<vmem>>, vector<2x1024xf32>
    %1 = math.absf %0 : vector<2x1024xf32>
    %cst = arith.constant 1.000000e+00 : f32
    %2 = vector.broadcast %cst : f32 to vector<2x1024xf32>
    %3 = arith.cmpf olt, %1, %2 : vector<2x1024xf32>
    %cst_1 = arith.constant 5.000000e-01 : f32
    %4 = vector.broadcast %cst_1 : f32 to vector<2x1024xf32>
    %5 = arith.mulf %4, %0 : vector<2x1024xf32>
    %6 = arith.mulf %5, %0 : vector<2x1024xf32>
    %cst_2 = arith.constant 5.000000e-01 : f32
    %7 = vector.broadcast %cst_2 : f32 to vector<2x1024xf32>
    %8 = arith.subf %1, %7 : vector<2x1024xf32>
    %9 = arith.select %3, %6, %8 : vector<2x1024xi1>, vector<2x1024xf32>
    %c0_3 = arith.constant 0 : index
    %c0_4 = arith.constant 0 : index
    %10 = vector.load %arg2[%c0_3, %c0_4] : memref<2x1024xf32, #tpu.memory_space<vmem>>, vector<2x1024xf32>
    tpu.vector_store %arg2[%c0_3, %c0_4], %9 {strides = array<i32>} : memref<2x1024xf32, #tpu.memory_space<vmem>>, vector<2x1024xf32>,
    return
  }
  func.func @transform_0(%arg0: i32) -> (i32, i32) {
    %c0_i32 = arith.constant 0 : i32
    %c0_i32_0 = arith.constant 0 : i32
    return %arg0, %c0_i32 : i32, i32
  }
  func.func @transform_1(%arg0: i32) -> (i32, i32) {
    %c0_i32 = arith.constant 0 : i32
    %c0_i32_0 = arith.constant 0 : i32
    return %arg0, %c0_i32 : i32, i32
  }
}

</mosaic_0001>

<llo_original>
// kernel: tpu_custom_call.1
$region0: #{tpu_custom_call.1}
  #allocation0 [shape = 'u32[]', space=smem, size = 0x4, offset = 0x4, fixed_abs, tag = 'smem constant byte address 0x4 - core index']
  #allocation1 [shape = 'u32[72,128]{1,0:T(1,128)}', space=vmem, size = 0x9000, scoped, tag = 'internal scratch']
  %s0 = inlined_call_operand.hbm [shape: f32[2,1024], index: 0, kind: input, shape index: {}]
  %s1 = inlined_call_operand.hbm [shape: f32[2,1024], index: 1, kind: output, shape index: {}]
  %s2 = sld [smem:[#allocation0]]
  $region18: #{tpu_custom_call.1} parent=0
    _
  %s4 = ssub.s32 1, %s2
  %s5 = scalar_select 0, %s4, %s2
  $region1: #{tpu_custom_call.1} parent=0
    #allocation2 [shape = 'u8[8192]{0}', space=vmem, size = 0x2000, scoped, tag = 'input window, operand 0, single buffered']
    #allocation3 [shape = 's32[1]{0}', space=sflag, size = 0x4, scoped, tag = 'scoped memory for tpu_custom_call.1']
    #allocation4 [shape = 's32[1]{0}', space=sflag, size = 0x4, scoped, tag = 'scoped memory for tpu_custom_call.1']
    #allocation5 [shape = 'u8[8192]{0}', space=vmem, size = 0x2000, scoped, tag = 'output window, operand 0, single buffered']
    %6 = vsyncpa [#allocation3], 0
    %7 = vsyncpa [#allocation4], 0
    // Predicated region
    $region2: #{tpu_custom_call.1} parent=1 // pred_check
      _
    $region3: #{tpu_custom_call.1} parent=1 // pred_check_branch
      %9 = sbr.rel (0) target = $region5
    $region4: #{tpu_custom_call.1} parent=1 // pred_region
      %11 = vsyncadd [#allocation3], 0
      %s13 = sshll.u32 %s0, 4
      %s14 = int_to_ptr.hbm [resolvable:$true] %s13
      %s15 = sshll.u32 [#allocation2], 4
      %s16 = int_to_ptr.vmem [resolvable:$true] %s15
      %18 = dma.hbm_to_vmem [thread:$0]  %s14, 256, %s16, [#allocation3]
    $region5: #{tpu_custom_call.1} parent=1 // pred_fallthru
      _
    // Predicated region
    $region6: #{tpu_custom_call.1} parent=1 // pred_check
      _
    $region7: #{tpu_custom_call.1} parent=1 // pred_check_branch
      %20 = sbr.rel (0) target = $region9
    $region8: #{tpu_custom_call.1} parent=1 // pred_region
      %22 = dma.done [#allocation3], 256
    $region9: #{tpu_custom_call.1} parent=1 // pred_fallthru
      _
    %v23 = vld [vmem:[#allocation2] sm:$0xff]
    %v24 = vld [vmem:[#allocation2 + $0x8] sm:$0xff]
    %v25 = vand.u32 2147483647, %v23
    %v26 = vand.u32 2147483647, %v24
    %vm27 = vcmp.lt.f32.partialorder %v25, 1.0
    %vm28 = vcmp.lt.f32.partialorder %v26, 1.0
    %v29 = vmul.f32 %v23, 0.5
    %v30 = vmul.f32 %v24, 0.5
    %v31 = vmul.f32 %v29, %v23
    %v32 = vmul.f32 %v30, %v24
    %v33 = vsub.f32 %v25, 0.5
    %v34 = vsub.f32 %v26, 0.5
    %v35 = vsel %vm27, %v31, %v33
    %v36 = vsel %vm28, %v32, %v34
    %37 = vst [vmem:[#allocation5] sm:$0xff] %v35
    %38 = vst [vmem:[#allocation5 + $0x8] sm:$0xff] %v36
    // Predicated region
    $region10: #{tpu_custom_call.1} parent=1 // pred_check
      _
    $region11: #{tpu_custom_call.1} parent=1 // pred_check_branch
      %40 = sbr.rel (0) target = $region13
    $region12: #{tpu_custom_call.1} parent=1 // pred_region
      %42 = vsyncadd [#allocation4], 0
      %s44 = sshll.u32 [#allocation5], 4
      %s45 = int_to_ptr.vmem [resolvable:$true] %s44
      %s46 = sshll.u32 %s1, 4
      %s47 = int_to_ptr.hbm [resolvable:$true] %s46
      %49 = dma.vmem_to_hbm [thread:$0]  %s45, 256, %s47, [#allocation4]
    $region13: #{tpu_custom_call.1} parent=1 // pred_fallthru
      _
    // Predicated region
    $region14: #{tpu_custom_call.1} parent=1 // pred_check
      _
    $region15: #{tpu_custom_call.1} parent=1 // pred_check_branch
      %51 = sbr.rel (0) target = $region17
    $region16: #{tpu_custom_call.1} parent=1 // pred_region
      %53 = dma.done [#allocation4], 256
    $region17: #{tpu_custom_call.1} parent=1 // pred_fallthru
      _
    %54 = vsyncpa [#allocation3], 1
    %55 = vsyncpa [#allocation4], 1

</llo_original>
